<compile_context>
chip_gen: v5e
topology: v5e:2x2
jax: 0.10.0
libtpu: 0.0.40
codegen_flags: <defaults>
</compile_context>

<pallas_src>
import functools
import math

import jax
import jax.numpy as jnp
import numpy as np
from jax.experimental import pallas as pl
from jax.experimental.pallas import tpu as pltpu


# ---------------------------------------------------------------------------
# Parameter setup (mirrors the PyTorch __init__)
# ---------------------------------------------------------------------------
def make_rope_tables(dim, max_seq_len=2048):
    """Raw sin/cos tables, identical to the PyTorch buffers (shape (L, D/2))."""
    inv_freq = 1.0 / (10000.0 ** (jnp.arange(0, dim, 2, dtype=jnp.float32) / dim))
    pos = jnp.arange(0, max_seq_len, dtype=jnp.float32)
    sinusoid = jnp.einsum("i,j->ij", pos, inv_freq)          # (L, D/2)
    return jnp.sin(sinusoid), jnp.cos(sinusoid)


def bake_rope_tables(sin, cos, heads):
    """Fold rotate_half's sign pattern, the half duplication AND the head
    broadcast into three (L, H*D) tables so the kernel does only muls/adds:

      out[..., j] = x[..., j]   * cos_full[j]
                  + x[..., j+q] * sinA[j]   (q = D/4; sinA == 0 on odd  D/4 blocks)
                  + x[..., j-q] * sinB[j]   (          sinB == 0 on even D/4 blocks)
    """
    dh = sin.shape[-1]                       # D/2
    # TODO(synk): general even-D (D % 4 != 0) follows torch.chunk's ceil/floor
    # split inside each half; only the common D % 4 == 0 case is vectorized.
    assert dh % 2 == 0, "baked RoPE tables require head_dim % 4 == 0"
    qtr = dh // 2                            # D/4
    zeros = jnp.zeros_like(sin[:, :qtr])
    cos_d = jnp.concatenate([cos, cos], axis=-1)                               # (L, D)
    sinA_d = jnp.concatenate([-sin[:, :qtr], zeros, -sin[:, :qtr], zeros], -1)  # (L, D)
    sinB_d = jnp.concatenate([zeros, sin[:, qtr:], zeros, sin[:, qtr:]], -1)    # (L, D)
    # Replicate across heads host-side so the kernel never broadcasts.
    cos_hd = jnp.tile(cos_d, (1, heads))
    sinA_hd = jnp.tile(sinA_d, (1, heads))
    sinB_hd = jnp.tile(sinB_d, (1, heads))
    return cos_hd, sinA_hd, sinB_hd


# ---------------------------------------------------------------------------
# Kernel
# ---------------------------------------------------------------------------
def rope_kernel(q_ref, k_ref, cos_ref, sinA_ref, sinB_ref, qo_ref, ko_ref,
                *, quarter, use_xlu_roll):
    cos = cos_ref[...]                       # (tS, Lw) f32
    sinA = sinA_ref[...]
    sinB = sinB_ref[...]
    lw = q_ref.shape[-1]

    def apply(x_ref, o_ref):
        x = x_ref[...].astype(jnp.float32)                   # (tS, Lw)
        if use_xlu_roll:
            # np.roll semantics: roll(x, s)[p] = x[p - s].
            fwd = pltpu.roll(x, lw - quarter, axis=1)        # x[lane + quarter]
            bwd = pltpu.roll(x, quarter, axis=1)             # x[lane - quarter]
        else:
            # Narrow / unaligned lane widths: plain roll fallback.
            fwd = jnp.roll(x, -quarter, axis=1)
            bwd = jnp.roll(x, quarter, axis=1)
        # Lanes whose roll partner wrapped across a head / fold / tile boundary
        # have a zero coefficient baked into sinA / sinB, so the wrap is safe.
        o_ref[...] = (x * cos + fwd * sinA + bwd * sinB).astype(o_ref.dtype)

    apply(q_ref, qo_ref)
    apply(k_ref, ko_ref)


# ---------------------------------------------------------------------------
# Wrapper
# ---------------------------------------------------------------------------
def rotary_1d_positional_encoding(q, k, cos_hd, sinA_hd, sinB_hd, *, seq_tile=None):
    """q, k: (B, S, H, D). cos_hd/sinA_hd/sinB_hd: baked (L, H*D) tables, L >= S."""
    B, S, H, D = q.shape
    assert D % 4 == 0, "this kernel requires head_dim % 4 == 0"
    HD = H * D
    assert cos_hd.shape[-1] == HD and cos_hd.shape[0] >= S

    # Lane-dense packing: heads always folded into lanes; additionally fold r
    # sequence rows so the lane width is a multiple of 128 (unmasked stores,
    # XLU rolls).  Correctness of the roll under folding is guaranteed by the
    # zeros baked into sinA / sinB.
    if HD % 128 == 0:
        r = 1
    else:
        r = 128 // math.gcd(HD, 128)
        if S % r != 0:
            r = 1   # TODO(synk): pad S (or HD) instead of the masked-store fallback.
    Lw = r * HD
    S_rows = S // r
    use_xlu_roll = (Lw % 128) == 0

    q2 = q.reshape(B, S_rows, Lw)
    k2 = k.reshape(B, S_rows, Lw)
    cos_t = cos_hd[:S].astype(jnp.float32).reshape(S_rows, Lw)
    sinA_t = sinA_hd[:S].astype(jnp.float32).reshape(S_rows, Lw)
    sinB_t = sinB_hd[:S].astype(jnp.float32).reshape(S_rows, Lw)

    # --- VMEM budgeting (generation aware: v7x has 64 MiB per TC) -----------
    item = q.dtype.itemsize
    # Per folded sequence row:
    #   q,k inputs + q,k outputs, double-buffered  : 4 * 2 * Lw * item
    #   cos/sinA/sinB, double-buffered (f32)       : 3 * 2 * Lw * 4
    #   in-kernel temporaries (x, fwd, bwd, result): ~4 * Lw * 4
    bytes_per_row = Lw * (4 * 2 * item + 3 * 2 * 4 + 4 * 4)
    try:
        vmem_cap = int(pltpu.get_tpu_info().vmem_capacity_bytes)
    except Exception:
        vmem_cap = 64 * 1024 * 1024                          # conservative (v7x / TC)

    if seq_tile is None:
        seq_tile = int(vmem_cap * 0.6) // bytes_per_row
        seq_tile = max(8, min(8192, (seq_tile // 8) * 8))
    tS = min(S_rows, seq_tile)
    if tS < S_rows:
        tS = max(8, (tS // 8) * 8)

    cdiv = lambda a, b: -(-a // b)
    # v7x has 2 TensorCores sharded across the "parallel" axes: make sure both
    # get work when the shape allows it.
    if cdiv(S_rows, tS) * B < 4 and S_rows >= 16:
        want_s = cdiv(4, B)
        tS = min(tS, max(8, (S_rows // want_s) // 8 * 8))

    num_s = cdiv(S_rows, tS)
    vmem_limit = int(min(int(vmem_cap * 0.8),
                         max(32 * 1024 * 1024, bytes_per_row * tS + (4 << 20))))

    grid_spec = pltpu.PrefetchScalarGridSpec(
        num_scalar_prefetch=0,
        grid=(num_s, B),                     # B innermost -> table DMA reused
        in_specs=[
            pl.BlockSpec((None, tS, Lw), lambda s, b: (b, s, 0)),
            pl.BlockSpec((None, tS, Lw), lambda s, b: (b, s, 0)),
            pl.BlockSpec((tS, Lw), lambda s, b: (s, 0)),
            pl.BlockSpec((tS, Lw), lambda s, b: (s, 0)),
            pl.BlockSpec((tS, Lw), lambda s, b: (s, 0)),
        ],
        out_specs=[
            pl.BlockSpec((None, tS, Lw), lambda s, b: (b, s, 0)),
            pl.BlockSpec((None, tS, Lw), lambda s, b: (b, s, 0)),
        ],
    )

    q_out, k_out = pl.pallas_call(
        functools.partial(rope_kernel, quarter=D // 4, use_xlu_roll=use_xlu_roll),
        out_shape=(
            jax.ShapeDtypeStruct((B, S_rows, Lw), q.dtype),
            jax.ShapeDtypeStruct((B, S_rows, Lw), k.dtype),
        ),
        grid_spec=grid_spec,
        compiler_params=pltpu.CompilerParams(
            dimension_semantics=("parallel", "parallel"),
            vmem_limit_bytes=vmem_limit,
        ),
    )(q2, k2, cos_t, sinA_t, sinB_t)

    return q_out.reshape(B, S, H, D), k_out.reshape(B, S, H, D)


# ---------------------------------------------------------------------------
# Pure-JAX mirror of the PyTorch forward, for verification
# ---------------------------------------------------------------------------
def rotary_reference(q, k, sin_raw, cos_raw):
    S = q.shape[1]
    D = q.shape[-1]
    c = cos_raw[:S][None, :, None, :]
    s = sin_raw[:S][None, :, None, :]

    def rot_half(x):
        n = x.shape[-1]
        half = -(-n // 2)                    # ceil, like torch.chunk
        x1, x2 = x[..., :half], x[..., half:]
        return jnp.concatenate([-x2, x1], axis=-1)

    def apply(x):
        x1, x2 = x[..., : D // 2], x[..., D // 2:]
        r1 = x1 * c + rot_half(x1) * s
        r2 = x2 * c + rot_half(x2) * s
        return jnp.concatenate([r1, r2], axis=-1)

    return apply(q), apply(k)


if __name__ == "__main__":
    B, S, H, D = 2, 8, 2, 16
    max_seq_len = 32

    key = jax.random.PRNGKey(0)
    kq, kk = jax.random.split(key)
    q = jax.random.normal(kq, (B, S, H, D), dtype=jnp.float32)
    k = jax.random.normal(kk, (B, S, H, D), dtype=jnp.float32)

    sin_raw, cos_raw = make_rope_tables(D, max_seq_len)
    cos_hd, sinA_hd, sinB_hd = bake_rope_tables(sin_raw, cos_raw, heads=H)

    rope = jax.jit(rotary_1d_positional_encoding)
    q_out, k_out = rope(q, k, cos_hd, sinA_hd, sinB_hd)
    jax.block_until_ready((q_out, k_out))

    q_ref, k_ref = rotary_reference(q, k, sin_raw, cos_raw)
    np.testing.assert_allclose(np.asarray(q_out), np.asarray(q_ref), rtol=1e-5, atol=1e-5)
    np.testing.assert_allclose(np.asarray(k_out), np.asarray(k_ref), rtol=1e-5, atol=1e-5)

    print("KERNEL_OK")
</pallas_src>

<mosaic_0001>
module attributes {stable_mosaic.version = 11 : i64} {
  func.func @rope_kernel(%arg0: i32, %arg1: i32, %arg2: memref<1x2x128xf32, #tpu.memory_space<vmem>>, %arg3: memref<1x2x128xf32, #tpu.memory_space<vmem>>, %arg4: memref<2x128xf32, #tpu.memory_space<vmem>>, %arg5: memref<2x128xf32, #tpu.memory_space<vmem>>, %arg6: memref<2x128xf32, #tpu.memory_space<vmem>>, %arg7: memref<1x2x128xf32, #tpu.memory_space<vmem>>, %arg8: memref<1x2x128xf32, #tpu.memory_space<vmem>>) attributes {dimension_semantics = [#tpu.dimension_semantics<parallel>, #tpu.dimension_semantics<parallel>], iteration_bounds = array<i64: 1, 2>, scalar_prefetch = 0 : i64, scratch_operands = 0 : i64, tpu.core_type = #tpu.core_type<tc>, window_params = [{transform_indices = @transform_0, window_bounds = array<i64: 1, 2, 128>}, {transform_indices = @transform_1, window_bounds = array<i64: 1, 2, 128>}, {transform_indices = @transform_2, window_bounds = array<i64: 2, 128>}, {transform_indices = @transform_3, window_bounds = array<i64: 2, 128>}, {transform_indices = @transform_4, window_bounds = array<i64: 2, 128>}, {transform_indices = @transform_5, window_bounds = array<i64: 1, 2, 128>}, {transform_indices = @transform_6, window_bounds = array<i64: 1, 2, 128>}]} {
    %c0 = arith.constant 0 : index
    %c0_0 = arith.constant 0 : index
    %0 = vector.load %arg4[%c0, %c0_0] : memref<2x128xf32, #tpu.memory_space<vmem>>, vector<2x128xf32>
    %c0_1 = arith.constant 0 : index
    %c0_2 = arith.constant 0 : index
    %1 = vector.load %arg5[%c0_1, %c0_2] : memref<2x128xf32, #tpu.memory_space<vmem>>, vector<2x128xf32>
    %c0_3 = arith.constant 0 : index
    %c0_4 = arith.constant 0 : index
    %2 = vector.load %arg6[%c0_3, %c0_4] : memref<2x128xf32, #tpu.memory_space<vmem>>, vector<2x128xf32>
    %c0_5 = arith.constant 0 : index
    %c0_6 = arith.constant 0 : index
    %c0_7 = arith.constant 0 : index
    %3 = vector.load %arg2[%c0_5, %c0_6, %c0_7] : memref<1x2x128xf32, #tpu.memory_space<vmem>>, vector<1x2x128xf32>
    %4 = vector.shape_cast %3 : vector<1x2x128xf32> to vector<2x128xf32>
    %c124_i32 = arith.constant 124 : i32
    %5 = tpu.dynamic_rotate %4 by %c124_i32 dim 1 : vector<2x128xf32>, i32 -> vector<2x128xf32>
    %c4_i32 = arith.constant 4 : i32
    %6 = tpu.dynamic_rotate %4 by %c4_i32 dim 1 : vector<2x128xf32>, i32 -> vector<2x128xf32>
    %7 = arith.mulf %4, %0 : vector<2x128xf32>
    %8 = arith.mulf %5, %1 : vector<2x128xf32>
    %9 = arith.addf %7, %8 : vector<2x128xf32>
    %10 = arith.mulf %6, %2 : vector<2x128xf32>
    %11 = arith.addf %9, %10 : vector<2x128xf32>
    %c0_8 = arith.constant 0 : index
    %c0_9 = arith.constant 0 : index
    %c0_10 = arith.constant 0 : index
    %12 = vector.load %arg7[%c0_8, %c0_9, %c0_10] : memref<1x2x128xf32, #tpu.memory_space<vmem>>, vector<1x2x128xf32>
    %13 = vector.shape_cast %12 : vector<1x2x128xf32> to vector<2x128xf32>
    %14 = vector.shape_cast %11 : vector<2x128xf32> to vector<1x2x128xf32>
    tpu.vector_store %arg7[%c0_8, %c0_9, %c0_10], %14 {strides = array<i32>} : memref<1x2x128xf32, #tpu.memory_space<vmem>>, vector<1x2x128xf32>,
    %c0_11 = arith.constant 0 : index
    %c0_12 = arith.constant 0 : index
    %c0_13 = arith.constant 0 : index
    %15 = vector.load %arg3[%c0_11, %c0_12, %c0_13] : memref<1x2x128xf32, #tpu.memory_space<vmem>>, vector<1x2x128xf32>
    %16 = vector.shape_cast %15 : vector<1x2x128xf32> to vector<2x128xf32>
    %c124_i32_14 = arith.constant 124 : i32
    %17 = tpu.dynamic_rotate %16 by %c124_i32_14 dim 1 : vector<2x128xf32>, i32 -> vector<2x128xf32>
    %c4_i32_15 = arith.constant 4 : i32
    %18 = tpu.dynamic_rotate %16 by %c4_i32_15 dim 1 : vector<2x128xf32>, i32 -> vector<2x128xf32>
    %19 = arith.mulf %16, %0 : vector<2x128xf32>
    %20 = arith.mulf %17, %1 : vector<2x128xf32>
    %21 = arith.addf %19, %20 : vector<2x128xf32>
    %22 = arith.mulf %18, %2 : vector<2x128xf32>
    %23 = arith.addf %21, %22 : vector<2x128xf32>
    %c0_16 = arith.constant 0 : index
    %c0_17 = arith.constant 0 : index
    %c0_18 = arith.constant 0 : index
    %24 = vector.load %arg8[%c0_16, %c0_17, %c0_18] : memref<1x2x128xf32, #tpu.memory_space<vmem>>, vector<1x2x128xf32>
    %25 = vector.shape_cast %24 : vector<1x2x128xf32> to vector<2x128xf32>
    %26 = vector.shape_cast %23 : vector<2x128xf32> to vector<1x2x128xf32>
    tpu.vector_store %arg8[%c0_16, %c0_17, %c0_18], %26 {strides = array<i32>} : memref<1x2x128xf32, #tpu.memory_space<vmem>>, vector<1x2x128xf32>,
    return
  }
  func.func @transform_0(%arg0: i32, %arg1: i32) -> (i32, i32, i32) {
    %c0_i32 = arith.constant 0 : i32
    %c0_i32_0 = arith.constant 0 : i32
    return %arg1, %arg0, %c0_i32 : i32, i32, i32
  }
  func.func @transform_1(%arg0: i32, %arg1: i32) -> (i32, i32, i32) {
    %c0_i32 = arith.constant 0 : i32
    %c0_i32_0 = arith.constant 0 : i32
    return %arg1, %arg0, %c0_i32 : i32, i32, i32
  }
  func.func @transform_2(%arg0: i32, %arg1: i32) -> (i32, i32) {
    %c0_i32 = arith.constant 0 : i32
    %c0_i32_0 = arith.constant 0 : i32
    return %arg0, %c0_i32 : i32, i32
  }
  func.func @transform_3(%arg0: i32, %arg1: i32) -> (i32, i32) {
    %c0_i32 = arith.constant 0 : i32
    %c0_i32_0 = arith.constant 0 : i32
    return %arg0, %c0_i32 : i32, i32
  }
  func.func @transform_4(%arg0: i32, %arg1: i32) -> (i32, i32) {
    %c0_i32 = arith.constant 0 : i32
    %c0_i32_0 = arith.constant 0 : i32
    return %arg0, %c0_i32 : i32, i32
  }
  func.func @transform_5(%arg0: i32, %arg1: i32) -> (i32, i32, i32) {
    %c0_i32 = arith.constant 0 : i32
    %c0_i32_0 = arith.constant 0 : i32
    return %arg1, %arg0, %c0_i32 : i32, i32, i32
  }
  func.func @transform_6(%arg0: i32, %arg1: i32) -> (i32, i32, i32) {
    %c0_i32 = arith.constant 0 : i32
    %c0_i32_0 = arith.constant 0 : i32
    return %arg1, %arg0, %c0_i32 : i32, i32, i32
  }
}

</mosaic_0001>

<llo_original>
// kernel: rotary_1d_positional_encoding.1
$region0: #{rotary_1d_positional_encoding.1}
  #allocation0 [shape = 'u32[]', space=smem, size = 0x4, offset = 0x4, fixed_abs, tag = 'smem constant byte address 0x4 - core index']
  #allocation1 [shape = 'u32[72,128]{1,0:T(1,128)}', space=vmem, size = 0x9000, scoped, tag = 'internal scratch']
  %s0 = inlined_call_operand.vmem [shape: f32[2,2,128], index: 0, kind: input, shape index: {}]
  %s1 = inlined_call_operand.vmem [shape: f32[2,2,128], index: 1, kind: input, shape index: {}]
  %s2 = inlined_call_operand.vmem [shape: f32[2,128], index: 2, kind: input, shape index: {}]
  %s3 = inlined_call_operand.vmem [shape: f32[2,128], index: 3, kind: input, shape index: {}]
  %s4 = inlined_call_operand.vmem [shape: f32[2,128], index: 4, kind: input, shape index: {}]
  %s5 = inlined_call_operand.vmem [shape: f32[2,2,128], index: 5, kind: output, shape index: {0}]
  %s6 = inlined_call_operand.vmem [shape: f32[2,2,128], index: 6, kind: output, shape index: {1}]
  %7 = xla_tuple %s5, %s6
  %s8 = sld [smem:[#allocation0]]
  $region61: #{rotary_1d_positional_encoding.1} parent=0
    _
  %s10 = ssub.s32 1, %s8
  %s11 = scalar_select 0, %s10, %s8
  loop: start=0, step=1, limit=4
  $region2: #{rotary_1d_positional_encoding.1} parent=0 // loop_pre_header
    _
  $region3: #{rotary_1d_positional_encoding.1} parent=0 // loop_header
    %s13 = sphi 0, %s17
    %p14 = scmp.ge.s32.totalorder %s13, 4
    %s20 = sphi 0, %s32
    %s21 = sphi 0, %s28
    %s22 = sphi 0, %s20
    %s23 = sphi 0, %s21
    %s24 = sphi 0, %s22
    %s25 = sphi 0, %s23
    %s37 = sphi 0, %s39
    %s40 = sphi 0, %s37
    %s41 = sphi 0, %s40
    %s57 = sphi 0, %s41
    %s65 = sphi 0, %s67
    %s68 = sphi 0, %s65
    %s69 = sphi 0, %s68
    %s85 = sphi 0, %s69
    %s91 = sphi 0, %s93
    %s94 = sphi 0, %s91
    %s95 = sphi 0, %s94
    %s111 = sphi 0, %s95
    %s117 = sphi 0, %s119
    %s120 = sphi 0, %s117
    %s121 = sphi 0, %s120
    %s137 = sphi 0, %s121
    %s143 = sphi 0, %s145
    %s146 = sphi 0, %s143
    %s147 = sphi 0, %s146
    %s163 = sphi 0, %s147
    %s171 = sphi 0, %s173
    %s174 = sphi 0, %s171
    %s175 = sphi 0, %s174
    %s191 = sphi 0, %s175
    %s199 = sphi 0, %s201
    %s202 = sphi 0, %s199
    %s203 = sphi 0, %s202
    %s219 = sphi 0, %s203
  $region4: #{rotary_1d_positional_encoding.1} parent=0 // loop_header_branch
    %16 = sbr.rel (%p14) target = $region8
  $region5: #{rotary_1d_positional_encoding.1} parent=0 // loop_body
    %s18 = ssub.s32 %s13, 1
    %s19 = ssub.s32 %s13, 2
    %s26 = sadd.s32 1, %s21
    %p27 = scmp.ge.s32.totalorder %s26, 2
    %s28 = scalar_select %p27, 0, %s26
    %s29 = sadd.s32 1, %s20
    %s30 = scalar_select %p27, %s29, %s20
    %p31 = scmp.ge.s32.totalorder %s30, 1
    %s32 = scalar_select %p31, 0, %s30
    %s33 = ssub.s32 %s21, %s28
    %s34 = ssub.s32 %s20, %s32
    %s35 = sor.u32 %s33, %s34
    %p36 = scmp.eq.s32.totalorder %s35, 0
    %s38 = sadd.s32 %s37, 1
    %s39 = scalar_select %p36, %s37, %s38
    %p42 = pneg %p36
    %p43 = scmp.eq.s32.totalorder %s13, 1
    %p44 = por %p42, %p43
    %p45 = scmp.ne.s32.totalorder %s37, %s40
    %p46 = scmp.eq.s32.totalorder %s13, 0
    %p47 = por %p45, %p46
    %p48 = scmp.ne.s32.totalorder %s37, %s40
    %p49 = scmp.eq.s32.totalorder %s18, 1
    %p50 = por %p48, %p49
    %p51 = scmp.ne.s32.totalorder %s40, %s41
    %p52 = scmp.eq.s32.totalorder %s18, 0
    %p53 = por %p51, %p52
    %p54 = scmp.ne.s32.totalorder %s40, %s41
    %p55 = scmp.eq.s32.totalorder %s19, 1
    %p56 = por %p54, %p55
    %p58 = scmp.ne.s32.totalorder %s41, %s57
    %p59 = scmp.eq.s32.totalorder %s19, 0
    %p60 = por %p58, %p59
    %s61 = ssub.s32 %s21, %s28
    %s62 = ssub.s32 %s20, %s32
    %s63 = sor.u32 %s61, %s62
    %p64 = scmp.eq.s32.totalorder %s63, 0
    %s66 = sadd.s32 %s65, 1
    %s67 = scalar_select %p64, %s65, %s66
    %p70 = pneg %p64
    %p71 = scmp.eq.s32.totalorder %s13, 1
    %p72 = por %p70, %p71
    %p73 = scmp.ne.s32.totalorder %s65, %s68
    %p74 = scmp.eq.s32.totalorder %s13, 0
    %p75 = por %p73, %p74
    %p76 = scmp.ne.s32.totalorder %s65, %s68
    %p77 = scmp.eq.s32.totalorder %s18, 1
    %p78 = por %p76, %p77
    %p79 = scmp.ne.s32.totalorder %s68, %s69
    %p80 = scmp.eq.s32.totalorder %s18, 0
    %p81 = por %p79, %p80
    %p82 = scmp.ne.s32.totalorder %s68, %s69
    %p83 = scmp.eq.s32.totalorder %s19, 1
    %p84 = por %p82, %p83
    %p86 = scmp.ne.s32.totalorder %s69, %s85
    %p87 = scmp.eq.s32.totalorder %s19, 0
    %p88 = por %p86, %p87
    %s89 = ssub.s32 %s20, %s32
    %p90 = scmp.eq.s32.totalorder %s89, 0
    %s92 = sadd.s32 %s91, 1
    %s93 = scalar_select %p90, %s91, %s92
    %p96 = pneg %p90
    %p97 = scmp.eq.s32.totalorder %s13, 1
    %p98 = por %p96, %p97
    %p99 = scmp.ne.s32.totalorder %s91, %s94
    %p100 = scmp.eq.s32.totalorder %s13, 0
    %p101 = por %p99, %p100
    %p102 = scmp.ne.s32.totalorder %s91, %s94
    %p103 = scmp.eq.s32.totalorder %s18, 1
    %p104 = por %p102, %p103
    %p105 = scmp.ne.s32.totalorder %s94, %s95
    %p106 = scmp.eq.s32.totalorder %s18, 0
    %p107 = por %p105, %p106
    %p108 = scmp.ne.s32.totalorder %s94, %s95
    %p109 = scmp.eq.s32.totalorder %s19, 1
    %p110 = por %p108, %p109
    %p112 = scmp.ne.s32.totalorder %s95, %s111
    %p113 = scmp.eq.s32.totalorder %s19, 0
    %p114 = por %p112, %p113
    %s115 = ssub.s32 %s20, %s32
    %p116 = scmp.eq.s32.totalorder %s115, 0
    %s118 = sadd.s32 %s117, 1
    %s119 = scalar_select %p116, %s117, %s118
    %p122 = pneg %p116
    %p123 = scmp.eq.s32.totalorder %s13, 1
    %p124 = por %p122, %p123
    %p125 = scmp.ne.s32.totalorder %s117, %s120
    %p126 = scmp.eq.s32.totalorder %s13, 0
    %p127 = por %p125, %p126
    %p128 = scmp.ne.s32.totalorder %s117, %s120
    %p129 = scmp.eq.s32.totalorder %s18, 1
    %p130 = por %p128, %p129
    %p131 = scmp.ne.s32.totalorder %s120, %s121
    %p132 = scmp.eq.s32.totalorder %s18, 0
    %p133 = por %p131, %p132
    %p134 = scmp.ne.s32.totalorder %s120, %s121
    %p135 = scmp.eq.s32.totalorder %s19, 1
    %p136 = por %p134, %p135
    %p138 = scmp.ne.s32.totalorder %s121, %s137
    %p139 = scmp.eq.s32.totalorder %s19, 0
    %p140 = por %p138, %p139
    %s141 = ssub.s32 %s20, %s32
    %p142 = scmp.eq.s32.totalorder %s141, 0
    %s144 = sadd.s32 %s143, 1
    %s145 = scalar_select %p142, %s143, %s144
    %p148 = pneg %p142
    %p149 = scmp.eq.s32.totalorder %s13, 1
    %p150 = por %p148, %p149
    %p151 = scmp.ne.s32.totalorder %s143, %s146
    %p152 = scmp.eq.s32.totalorder %s13, 0
    %p153 = por %p151, %p152
    %p154 = scmp.ne.s32.totalorder %s143, %s146
    %p155 = scmp.eq.s32.totalorder %s18, 1
    %p156 = por %p154, %p155
    %p157 = scmp.ne.s32.totalorder %s146, %s147
    %p158 = scmp.eq.s32.totalorder %s18, 0
    %p159 = por %p157, %p158
    %p160 = scmp.ne.s32.totalorder %s146, %s147
    %p161 = scmp.eq.s32.totalorder %s19, 1
    %p162 = por %p160, %p161
    %p164 = scmp.ne.s32.totalorder %s147, %s163
    %p165 = scmp.eq.s32.totalorder %s19, 0
    %p166 = por %p164, %p165
    %s167 = ssub.s32 %s21, %s28
    %s168 = ssub.s32 %s20, %s32
    %s169 = sor.u32 %s167, %s168
    %p170 = scmp.eq.s32.totalorder %s169, 0
    %s172 = sadd.s32 %s171, 1
    %s173 = scalar_select %p170, %s171, %s172
    %p176 = pneg %p170
    %p177 = scmp.eq.s32.totalorder %s13, 1
    %p178 = por %p176, %p177
    %p179 = scmp.ne.s32.totalorder %s171, %s174
    %p180 = scmp.eq.s32.totalorder %s13, 0
    %p181 = por %p179, %p180
    %p182 = scmp.ne.s32.totalorder %s171, %s174
    %p183 = scmp.eq.s32.totalorder %s18, 1
    %p184 = por %p182, %p183
    %p185 = scmp.ne.s32.totalorder %s174, %s175
    %p186 = scmp.eq.s32.totalorder %s18, 0
    %p187 = por %p185, %p186
    %p188 = scmp.ne.s32.totalorder %s174, %s175
    %p189 = scmp.eq.s32.totalorder %s19, 1
    %p190 = por %p188, %p189
    %p192 = scmp.ne.s32.totalorder %s175, %s191
    %p193 = scmp.eq.s32.totalorder %s19, 0
    %p194 = por %p192, %p193
    %s195 = ssub.s32 %s21, %s28
    %s196 = ssub.s32 %s20, %s32
    %s197 = sor.u32 %s195, %s196
    %p198 = scmp.eq.s32.totalorder %s197, 0
    %s200 = sadd.s32 %s199, 1
    %s201 = scalar_select %p198, %s199, %s200
    %p204 = pneg %p198
    %p205 = scmp.eq.s32.totalorder %s13, 1
    %p206 = por %p204, %p205
    %p207 = scmp.ne.s32.totalorder %s199, %s202
    %p208 = scmp.eq.s32.totalorder %s13, 0
    %p209 = por %p207, %p208
    %p210 = scmp.ne.s32.totalorder %s199, %s202
    %p211 = scmp.eq.s32.totalorder %s18, 1
    %p212 = por %p210, %p211
    %p213 = scmp.ne.s32.totalorder %s202, %s203
    %p214 = scmp.eq.s32.totalorder %s18, 0
    %p215 = por %p213, %p214
    %p216 = scmp.ne.s32.totalorder %s202, %s203
    %p217 = scmp.eq.s32.totalorder %s19, 1
    %p218 = por %p216, %p217
    %p220 = scmp.ne.s32.totalorder %s203, %s219
    %p221 = scmp.eq.s32.totalorder %s19, 0
    %p222 = por %p220, %p221
    %p223 = scmp.le.s32.totalorder 1, %s13
    %p224 = scmp.lt.s32.totalorder %s13, 3
    %p225 = pnand %p223, %p224
    %p226 = pneg %p225
    // Predicated region
    $region9: #{rotary_1d_positional_encoding.1} parent=5 // pred_check
      _
    $region10: #{rotary_1d_positional_encoding.1} parent=5 // pred_check_branch
      %228 = sbr.rel (%p225) target = $region12
    $region11: #{rotary_1d_positional_encoding.1} parent=5 // pred_region
      %s229 = ssub.s32 %s13, 1
      // Predicated region
      $region13: #{rotary_1d_positional_encoding.1} parent=11 // pred_check
        %p230 = pneg %p107
      $region14: #{rotary_1d_positional_encoding.1} parent=11 // pred_check_branch
        %232 = sbr.rel (%p230) target = $region16
      $region15: #{rotary_1d_positional_encoding.1} parent=11 // pred_region
        %p233 = scmp.lt.s32.totalorder %s22, 0
        %s234 = scalar_select %p233, %s22, 0
        %s235 = smul.addr %s234, 2
        %s236 = scalar_lea.vmem %s2, %s235
      $region16: #{rotary_1d_positional_encoding.1} parent=11 // pred_fallthru
        _
      // Predicated region
      $region17: #{rotary_1d_positional_encoding.1} parent=11 // pred_check
        %p237 = pneg %p133
      $region18: #{rotary_1d_positional_encoding.1} parent=11 // pred_check_branch
        %239 = sbr.rel (%p237) target = $region20
      $region19: #{rotary_1d_positional_encoding.1} parent=11 // pred_region
        %p240 = scmp.lt.s32.totalorder %s22, 0
        %s241 = scalar_select %p240, %s22, 0
        %s242 = smul.addr %s241, 2
        %s243 = scalar_lea.vmem %s3, %s242
      $region20: #{rotary_1d_positional_encoding.1} parent=11 // pred_fallthru
        _
      // Predicated region
      $region21: #{rotary_1d_positional_encoding.1} parent=11 // pred_check
        %p244 = pneg %p159
      $region22: #{rotary_1d_positional_encoding.1} parent=11 // pred_check_branch
        %246 = sbr.rel (%p244) target = $region24
      $region23: #{rotary_1d_positional_encoding.1} parent=11 // pred_region
        %p247 = scmp.lt.s32.totalorder %s22, 0
        %s248 = scalar_select %p247, %s22, 0
        %s249 = smul.addr %s248, 2
        %s250 = scalar_lea.vmem %s4, %s249
      $region24: #{rotary_1d_positional_encoding.1} parent=11 // pred_fallthru
        _
    $region12: #{rotary_1d_positional_encoding.1} parent=5 // pred_fallthru
      _
    %p251 = scmp.lt.s32.totalorder %s13, 2
    // Predicated region
    $region25: #{rotary_1d_positional_encoding.1} parent=5 // pred_check
      %p252 = pneg %p251
    $region26: #{rotary_1d_positional_encoding.1} parent=5 // pred_check_branch
      %254 = sbr.rel (%p252) target = $region28
    $region27: #{rotary_1d_positional_encoding.1} parent=5 // pred_region
      // Predicated region
      $region29: #{rotary_1d_positional_encoding.1} parent=27 // pred_check
        %p255 = pneg %p47
      $region30: #{rotary_1d_positional_encoding.1} parent=27 // pred_check_branch
        %257 = sbr.rel (%p255) target = $region32
      $region31: #{rotary_1d_positional_encoding.1} parent=27 // pred_region
        %p258 = scmp.lt.s32.totalorder %s21, 1
        %s259 = scalar_select %p258, %s21, 1
        %p260 = scmp.lt.s32.totalorder %s20, 0
        %s261 = scalar_select %p260, %s20, 0
        %s262 = sadd.s32 %s261, %s259
        %s263 = smul.addr %s262, 2
        %s264 = scalar_lea.vmem %s0, %s263
      $region32: #{rotary_1d_positional_encoding.1} parent=27 // pred_fallthru
        _
      // Predicated region
      $region33: #{rotary_1d_positional_encoding.1} parent=27 // pred_check
        %p265 = pneg %p75
      $region34: #{rotary_1d_positional_encoding.1} parent=27 // pred_check_branch
        %267 = sbr.rel (%p265) target = $region36
      $region35: #{rotary_1d_positional_encoding.1} parent=27 // pred_region
        %p268 = scmp.lt.s32.totalorder %s21, 1
        %s269 = scalar_select %p268, %s21, 1
        %p270 = scmp.lt.s32.totalorder %s20, 0
        %s271 = scalar_select %p270, %s20, 0
        %s272 = sadd.s32 %s271, %s269
        %s273 = smul.addr %s272, 2
        %s274 = scalar_lea.vmem %s1, %s273
      $region36: #{rotary_1d_positional_encoding.1} parent=27 // pred_fallthru
        _
    $region28: #{rotary_1d_positional_encoding.1} parent=5 // pred_fallthru
      _
    %p275 = scmp.le.s32.totalorder 1, %s13
    %p276 = scmp.lt.s32.totalorder %s13, 3
    %p277 = pnand %p275, %p276
    %p278 = pneg %p277
    // Predicated region
    $region37: #{rotary_1d_positional_encoding.1} parent=5 // pred_check
      _
    $region38: #{rotary_1d_positional_encoding.1} parent=5 // pred_check_branch
      %280 = sbr.rel (%p277) target = $region40
    $region39: #{rotary_1d_positional_encoding.1} parent=5 // pred_region
      %s281 = ssub.s32 %s13, 1
      %p282 = scmp.lt.s32.totalorder %s23, 1
      %s283 = scalar_select %p282, %s23, 1
      %p284 = scmp.lt.s32.totalorder %s22, 0
      %s285 = scalar_select %p284, %s22, 0
      %s286 = sadd.s32 %s285, %s283
      %s287 = smul.addr %s286, 2
      %s288 = scalar_lea.vmem %s0, %s287
      %p289 = pneg %p53
      %p290 = pneg %p50
      %p291 = scmp.lt.s32.totalorder %s23, 1
      %s292 = scalar_select %p291, %s23, 1
      %p293 = scmp.lt.s32.totalorder %s22, 0
      %s294 = scalar_select %p293, %s22, 0
      %s295 = sadd.s32 %s294, %s292
      %s296 = smul.addr %s295, 2
      %s297 = scalar_lea.vmem %s1, %s296
      %p298 = pneg %p81
      %p299 = pneg %p78
      %p300 = scmp.lt.s32.totalorder %s22, 0
      %s301 = scalar_select %p300, %s22, 0
      %s302 = smul.addr %s301, 2
      %s303 = scalar_lea.vmem %s2, %s302
      %p304 = pneg %p107
      %p305 = pneg %p104
      %p306 = scmp.lt.s32.totalorder %s22, 0
      %s307 = scalar_select %p306, %s22, 0
      %s308 = smul.addr %s307, 2
      %s309 = scalar_lea.vmem %s3, %s308
      %p310 = pneg %p133
      %p311 = pneg %p130
      %p312 = scmp.lt.s32.totalorder %s22, 0
      %s313 = scalar_select %p312, %s22, 0
      %s314 = smul.addr %s313, 2
      %s315 = scalar_lea.vmem %s4, %s314
      %p316 = pneg %p159
      %p317 = pneg %p156
      %p318 = pneg %p187
      %p319 = pneg %p184
      %p320 = scmp.lt.s32.totalorder %s23, 1
      %s321 = scalar_select %p320, %s23, 1
      %p322 = scmp.lt.s32.totalorder %s22, 0
      %s323 = scalar_select %p322, %s22, 0
      %s324 = sadd.s32 %s323, %s321
      %s325 = smul.addr %s324, 2
      %s326 = scalar_lea.vmem %s5, %s325
      %p327 = pneg %p215
      %p328 = pneg %p212
      %p329 = scmp.lt.s32.totalorder %s23, 1
      %s330 = scalar_select %p329, %s23, 1
      %p331 = scmp.lt.s32.totalorder %s22, 0
      %s332 = scalar_select %p331, %s22, 0
      %s333 = sadd.s32 %s332, %s330
      %s334 = smul.addr %s333, 2
      %s335 = scalar_lea.vmem %s6, %s334
      %p336 = scmp.lt.s32.totalorder %s23, 1
      %s337 = scalar_select %p336, %s23, 1
      %p338 = scmp.lt.s32.totalorder %s22, 0
      %s339 = scalar_select %p338, %s22, 0
      %s340 = sadd.s32 %s339, %s337
      %s341 = smul.addr %s340, 2
      %s342 = scalar_lea.vmem %s0, %s341
      %p343 = scmp.lt.s32.totalorder %s23, 1
      %s344 = scalar_select %p343, %s23, 1
      %p345 = scmp.lt.s32.totalorder %s22, 0
      %s346 = scalar_select %p345, %s22, 0
      %s347 = sadd.s32 %s346, %s344
      %s348 = smul.addr %s347, 2
      %s349 = scalar_lea.vmem %s1, %s348
      %p350 = scmp.lt.s32.totalorder %s22, 0
      %s351 = scalar_select %p350, %s22, 0
      %s352 = smul.addr %s351, 2
      %s353 = scalar_lea.vmem %s2, %s352
      %p354 = scmp.lt.s32.totalorder %s22, 0
      %s355 = scalar_select %p354, %s22, 0
      %s356 = smul.addr %s355, 2
      %s357 = scalar_lea.vmem %s3, %s356
      %p358 = scmp.lt.s32.totalorder %s22, 0
      %s359 = scalar_select %p358, %s22, 0
      %s360 = smul.addr %s359, 2
      %s361 = scalar_lea.vmem %s4, %s360
      %p362 = scmp.lt.s32.totalorder %s23, 1
      %s363 = scalar_select %p362, %s23, 1
      %p364 = scmp.lt.s32.totalorder %s22, 0
      %s365 = scalar_select %p364, %s22, 0
      %s366 = sadd.s32 %s365, %s363
      %s367 = smul.addr %s366, 2
      %s368 = scalar_lea.vmem %s5, %s367
      %p369 = scmp.lt.s32.totalorder %s23, 1
      %s370 = scalar_select %p369, %s23, 1
      %p371 = scmp.lt.s32.totalorder %s22, 0
      %s372 = scalar_select %p371, %s22, 0
      %s373 = sadd.s32 %s372, %s370
      %s374 = smul.addr %s373, 2
      %s375 = scalar_lea.vmem %s6, %s374
      %v376 = vld [vmem:[%s353] sm:$0x3]
      %v377 = vld [vmem:[%s357] sm:$0x3]
      %v378 = vld [vmem:[%s361] sm:$0x3]
      %v379 = vld [vmem:[%s342] sm:$0x3]
      %380 = vrot.lane.b32.xlu0 %v379, 124
      %v381 = vpop.permute.xlu0 %380
      %382 = vrot.lane.b32.xlu0 %v379, 4
      %v383 = vpop.permute.xlu0 %382
      %v384 = vmul.f32 %v379, %v376
      %v385 = vmul.f32 %v381, %v377
      %v386 = vadd.f32 %v384, %v385
      %v387 = vmul.f32 %v383, %v378
      %v388 = vadd.f32 %v386, %v387
      %389 = vst [vmem:[%s368] sm:$0x3] %v388
      %v390 = vld [vmem:[%s349] sm:$0x3]
      %391 = vrot.lane.b32.xlu0 %v390, 124
      %v392 = vpop.permute.xlu0 %391
      %393 = vrot.lane.b32.xlu0 %v390, 4
      %v394 = vpop.permute.xlu0 %393
      %v395 = vmul.f32 %v390, %v376
      %v396 = vmul.f32 %v392, %v377
      %v397 = vadd.f32 %v395, %v396
      %v398 = vmul.f32 %v394, %v378
      %v399 = vadd.f32 %v397, %v398
      %400 = vst [vmem:[%s375] sm:$0x3] %v399
      %p401 = scmp.lt.s32.totalorder %s23, 1
      %s402 = scalar_select %p401, %s23, 1
      %p403 = scmp.lt.s32.totalorder %s22, 0
      %s404 = scalar_select %p403, %s22, 0
      %s405 = sadd.s32 %s404, %s402
      %s406 = smul.addr %s405, 2
      %s407 = scalar_lea.vmem %s5, %s406
      %p408 = scmp.lt.s32.totalorder %s23, 1
      %s409 = scalar_select %p408, %s23, 1
      %p410 = scmp.lt.s32.totalorder %s22, 0
      %s411 = scalar_select %p410, %s22, 0
      %s412 = sadd.s32 %s411, %s409
      %s413 = smul.addr %s412, 2
      %s414 = scalar_lea.vmem %s6, %s413
      // Predicated region
      $region41: #{rotary_1d_positional_encoding.1} parent=39 // pred_check
        %p415 = pneg %p184
      $region42: #{rotary_1d_positional_encoding.1} parent=39 // pred_check_branch
        %417 = sbr.rel (%p415) target = $region44
      $region43: #{rotary_1d_positional_encoding.1} parent=39 // pred_region
        _
      $region44: #{rotary_1d_positional_encoding.1} parent=39 // pred_fallthru
        _
      // Predicated region
      $region45: #{rotary_1d_positional_encoding.1} parent=39 // pred_check
        %p418 = pneg %p212
      $region46: #{rotary_1d_positional_encoding.1} parent=39 // pred_check_branch
        %420 = sbr.rel (%p418) target = $region48
      $region47: #{rotary_1d_positional_encoding.1} parent=39 // pred_region
        _
      $region48: #{rotary_1d_positional_encoding.1} parent=39 // pred_fallthru
        _
    $region40: #{rotary_1d_positional_encoding.1} parent=5 // pred_fallthru
      _
    %p421 = scmp.le.s32.totalorder 2, %s13
    // Predicated region
    $region49: #{rotary_1d_positional_encoding.1} parent=5 // pred_check
      %p422 = pneg %p421
    $region50: #{rotary_1d_positional_encoding.1} parent=5 // pred_check_branch
      %424 = sbr.rel (%p422) target = $region52
    $region51: #{rotary_1d_positional_encoding.1} parent=5 // pred_region
      %s425 = ssub.s32 %s13, 2
      // Predicated region
      $region53: #{rotary_1d_positional_encoding.1} parent=51 // pred_check
        %p426 = pneg %p190
      $region54: #{rotary_1d_positional_encoding.1} parent=51 // pred_check_branch
        %428 = sbr.rel (%p426) target = $region56
      $region55: #{rotary_1d_positional_encoding.1} parent=51 // pred_region
        %p429 = scmp.lt.s32.totalorder %s25, 1
        %s430 = scalar_select %p429, %s25, 1
        %p431 = scmp.lt.s32.totalorder %s24, 0
        %s432 = scalar_select %p431, %s24, 0
        %s433 = sadd.s32 %s432, %s430
        %s434 = smul.addr %s433, 2
        %s435 = scalar_lea.vmem %s5, %s434
      $region56: #{rotary_1d_positional_encoding.1} parent=51 // pred_fallthru
        _
      // Predicated region
      $region57: #{rotary_1d_positional_encoding.1} parent=51 // pred_check
        %p436 = pneg %p218
      $region58: #{rotary_1d_positional_encoding.1} parent=51 // pred_check_branch
        %438 = sbr.rel (%p436) target = $region60
      $region59: #{rotary_1d_positional_encoding.1} parent=51 // pred_region
        %p439 = scmp.lt.s32.totalorder %s25, 1
        %s440 = scalar_select %p439, %s25, 1
        %p441 = scmp.lt.s32.totalorder %s24, 0
        %s442 = scalar_select %p441, %s24, 0
        %s443 = sadd.s32 %s442, %s440
        %s444 = smul.addr %s443, 2
        %s445 = scalar_lea.vmem %s6, %s444
      $region60: #{rotary_1d_positional_encoding.1} parent=51 // pred_fallthru
        _
    $region52: #{rotary_1d_positional_encoding.1} parent=5 // pred_fallthru
      _
  $region6: #{rotary_1d_positional_encoding.1} parent=0 // loop_footer
    %s17 = sadd.s32 1, %s13
  $region7: #{rotary_1d_positional_encoding.1} parent=0 // loop_footer_branch
    %12 = sbr.rel target = $region3
  $region8: #{rotary_1d_positional_encoding.1} parent=0 // loop_exit
    _

</llo_original>
